<compile_context>
chip_gen: v7x
topology: tpu7x:2x2x1
jax: 0.10.0
libtpu: 0.0.40
codegen_flags: <defaults>
</compile_context>

<pallas_src>
import jax
import jax.numpy as jnp
from jax.experimental import pallas as pl
from jax.experimental.pallas import tpu as pltpu

# Problem sizes (small, consistent with a scalable-GNN "SGC-style" base model).
N = 32    # number of graph nodes (rows of the preprocessed feature matrix)
F = 32    # input feature dim
H = 32    # hidden dim of the base MLP
C = 8     # output classes
B = 16    # number of query node indices (len(idx))

# Packed-slab layout (single f32 HBM buffer, lane width LW).
LW = 40                      # >= max(F, H, C) + 1, rounded up to a multiple of 8
ROW_FEAT = 0                 # feature block rows   [0,  N )  : [feature | 1]
ROW_W1 = ROW_FEAT + N        # 32;  W1 block rows   [32, 72)  : [[w1 0],[b1 1],[0 0]]
ROW_W2 = ROW_W1 + LW         # 72;  W2 block rows   [72, 112) : [[w2],[b2],[0]]
TOTAL_ROWS = ROW_W2 + LW     # 112 (all block starts are multiples of 8)


def _simbase_kernel(idx_ref,    # VMEM (B, 1) int32
                    slab_ref,   # VMEM (TOTAL_ROWS, LW) f32 packed params
                    out_ref):   # VMEM (B, C) f32
    b = out_ref.shape[0]

    # Row gather as a one-hot matmul on the MXU: (B, N) @ (N, LW) -> (B, LW).
    idx = idx_ref[...]                                          # (B, 1) int32
    cols = jax.lax.broadcasted_iota(jnp.int32, (b, N), 1)       # (B, N) column ids
    one_hot = (idx == cols).astype(jnp.float32)                 # (B, N)

    # Static, 8-row-aligned views into the packed slab (no extra DMAs).
    feat_aug = slab_ref[pl.ds(ROW_FEAT, N), :]   # (N, LW): [:, :F]=feature, [:, F]=1
    w1_ext   = slab_ref[pl.ds(ROW_W1, LW), :]    # (LW, LW): [:F,:H]=w1, [F,:H]=b1, [F,H]=1
    w2_aug   = slab_ref[pl.ds(ROW_W2, LW), :]    # (LW, LW): [:H,:C]=w2, [H,:C]=b2

    # x_aug carries the gathered row plus a ones column (bias passthrough).
    x_aug = jnp.dot(one_hot, feat_aug, preferred_element_type=jnp.float32)     # (B, LW)
    # Column H of h_aug stays exactly 1 (relu(1)=1), feeding the b2 row of w2_aug.
    h_aug = jnp.maximum(
        jnp.dot(x_aug, w1_ext, preferred_element_type=jnp.float32), 0.0)       # (B, LW)
    o_full = jnp.dot(h_aug, w2_aug, preferred_element_type=jnp.float32)        # (B, LW)

    out_ref[...] = o_full[:, :C].astype(out_ref.dtype)          # (16,8): one masked vst


def pack_params(feature, w1, b1, w2, b2):
    """Pack feature + MLP params (with folded biases) into one f32 slab.

    For constant params, call once and reuse the slab across forward() calls.
    """
    slab = jnp.zeros((TOTAL_ROWS, LW), jnp.float32)
    # Feature block with a trailing ones column.
    slab = slab.at[ROW_FEAT:ROW_FEAT + N, :F].set(feature.astype(jnp.float32))
    slab = slab.at[ROW_FEAT:ROW_FEAT + N, F].set(1.0)
    # W1 block augmented with bias row and ones-passthrough column.
    slab = slab.at[ROW_W1:ROW_W1 + F, :H].set(w1.astype(jnp.float32))
    slab = slab.at[ROW_W1 + F, :H].set(b1.reshape(-1).astype(jnp.float32))
    slab = slab.at[ROW_W1 + F, H].set(1.0)
    # W2 block augmented with bias row.
    slab = slab.at[ROW_W2:ROW_W2 + H, :C].set(w2.astype(jnp.float32))
    slab = slab.at[ROW_W2 + H, :C].set(b2.reshape(-1).astype(jnp.float32))
    return slab


def simbase_forward_packed(idx, slab):
    """Forward with pre-packed params (2 input DMAs, grid-less)."""
    idx2d = idx.reshape(-1, 1).astype(jnp.int32)   # (B, 1) so the gather index lives in VMEM
    vmem = pl.BlockSpec(memory_space=pltpu.MemorySpace.VMEM)
    return pl.pallas_call(
        _simbase_kernel,
        out_shape=jax.ShapeDtypeStruct((idx2d.shape[0], C), jnp.float32),
        in_specs=[vmem, vmem],
        out_specs=vmem,
    )(idx2d, slab)


def simbase_forward(idx, feature, w1, b1, w2, b2):
    """Pallas implementation of SimBaseSGModel.forward (adj=None, non-learnable msg op)."""
    return simbase_forward_packed(idx, pack_params(feature, w1, b1, w2, b2))


def simbase_forward_ref(idx, feature, w1, b1, w2, b2):
    x = feature[idx]
    h = jnp.maximum(x @ w1 + b1, 0.0)
    return h @ w2 + b2


if __name__ == "__main__":
    key = jax.random.PRNGKey(0)
    k_feat, k_w1, k_b1, k_w2, k_b2, k_idx = jax.random.split(key, 6)

    # "processed_feature" (already propagated / aggregated node features).
    feature = jax.random.normal(k_feat, (N, F), dtype=jnp.float32)

    # Deterministic base-model (2-layer MLP) parameters.
    w1 = jax.random.normal(k_w1, (F, H), dtype=jnp.float32) * 0.1
    b1 = jax.random.normal(k_b1, (H,), dtype=jnp.float32) * 0.1
    w2 = jax.random.normal(k_w2, (H, C), dtype=jnp.float32) * 0.1
    b2 = jax.random.normal(k_b2, (C,), dtype=jnp.float32) * 0.1

    # Query node indices.
    idx = jax.random.randint(k_idx, (B,), 0, N, dtype=jnp.int32)

    # Pack once (params are constant across calls), then run the kernel.
    slab = pack_params(feature, w1, b1, w2, b2)
    out = simbase_forward_packed(idx, slab)
    out = jax.block_until_ready(out)

    ref = simbase_forward_ref(idx, feature, w1, b1, w2, b2)
    assert out.shape == (B, C)
    assert jnp.allclose(out, ref, atol=1e-5, rtol=1e-5)

    # TODO(synk): pre/post graph propagation (sparse adj @ feature) and the
    # learnable-weighted message aggregation branches are dispatch glue in this
    # abstract base class (ops are None in __init__) and are not modeled here.

    print("KERNEL_OK")
</pallas_src>

<mosaic_0001>
module attributes {stable_mosaic.version = 11 : i64} {
  func.func @_simbase_kernel(%arg0: memref<16x1xi32, #tpu.memory_space<vmem>>, %arg1: memref<112x40xf32, #tpu.memory_space<vmem>>, %arg2: memref<16x8xf32, #tpu.memory_space<vmem>>) attributes {dimension_semantics = [], scalar_prefetch = 0 : i64, scratch_operands = 0 : i64, tpu.core_type = #tpu.core_type<tc>} {
    %c0 = arith.constant 0 : index
    %c0_0 = arith.constant 0 : index
    %0 = vector.load %arg0[%c0, %c0_0] : memref<16x1xi32, #tpu.memory_space<vmem>>, vector<16x1xi32>
    %1 = tpu.iota {dimensions = array<i32: 1>} : vector<16x32xi32>
    %2 = vector.broadcast %0 : vector<16x1xi32> to vector<16x32xi32>
    %3 = arith.cmpi eq, %2, %1 : vector<16x32xi32>
    %4 = arith.extui %3 : vector<16x32xi1> to vector<16x32xi32>
    %5 = arith.sitofp %4 : vector<16x32xi32> to vector<16x32xf32>
    %c0_1 = arith.constant 0 : index
    %c0_2 = arith.constant 0 : index
    %6 = vector.load %arg1[%c0_1, %c0_2] : memref<112x40xf32, #tpu.memory_space<vmem>>, vector<32x40xf32>
    %c32 = arith.constant 32 : index
    %c0_3 = arith.constant 0 : index
    %7 = vector.load %arg1[%c32, %c0_3] : memref<112x40xf32, #tpu.memory_space<vmem>>, vector<40x40xf32>
    %c72 = arith.constant 72 : index
    %c0_4 = arith.constant 0 : index
    %8 = vector.load %arg1[%c72, %c0_4] : memref<112x40xf32, #tpu.memory_space<vmem>>, vector<40x40xf32>
    %cst = arith.constant dense<0.000000e+00> : vector<16x40xf32>
    %9 = tpu.matmul %5, %6, %cst {dimension_numbers = #tpu.dot_dimension_numbers<[1], [0], [0], [1], [0, 0, 1, 1], [], []>} : vector<16x32xf32>, vector<32x40xf32>, vector<16x40xf32> -> vector<16x40xf32>
    %cst_5 = arith.constant dense<0.000000e+00> : vector<16x40xf32>
    %10 = tpu.matmul %9, %7, %cst_5 {dimension_numbers = #tpu.dot_dimension_numbers<[1], [0], [0], [1], [0, 0, 1, 1], [], []>} : vector<16x40xf32>, vector<40x40xf32>, vector<16x40xf32> -> vector<16x40xf32>
    %cst_6 = arith.constant 0.000000e+00 : f32
    %11 = vector.broadcast %cst_6 : f32 to vector<16x40xf32>
    %12 = arith.maximumf %10, %11 : vector<16x40xf32>
    %cst_7 = arith.constant dense<0.000000e+00> : vector<16x40xf32>
    %13 = tpu.matmul %12, %8, %cst_7 {dimension_numbers = #tpu.dot_dimension_numbers<[1], [0], [0], [1], [0, 0, 1, 1], [], []>} : vector<16x40xf32>, vector<40x40xf32>, vector<16x40xf32> -> vector<16x40xf32>
    %14 = vector.extract_strided_slice %13 {offsets = [0, 0], sizes = [16, 8], strides = [1, 1]} : vector<16x40xf32> to vector<16x8xf32>
    %c0_8 = arith.constant 0 : index
    %c0_9 = arith.constant 0 : index
    %15 = vector.load %arg2[%c0_8, %c0_9] : memref<16x8xf32, #tpu.memory_space<vmem>>, vector<16x8xf32>
    tpu.vector_store %arg2[%c0_8, %c0_9], %14 {strides = array<i32>} : memref<16x8xf32, #tpu.memory_space<vmem>>, vector<16x8xf32>,
    return
  }
}

</mosaic_0001>

<llo_original>
// kernel: tpu_custom_call.1
$region0: #{tpu_custom_call.1}
  #allocation0 [shape = 'u32[]', space=smem, size = 0x4, offset = 0x4, fixed_abs, tag = 'smem constant byte address 0x4 - core index']
  #allocation1 [shape = 'u32[144,128]{1,0:T(1,128)}', space=vmem, size = 0x12000, scoped, tag = 'internal scratch']
  %s0 = inlined_call_operand.vmem [shape: s32[16,1], index: 0, kind: input, shape index: {}]
  %s1 = inlined_call_operand.vmem [shape: f32[112,40], index: 1, kind: input, shape index: {}]
  %s2 = inlined_call_operand.vmem [shape: f32[16,8], index: 2, kind: output, shape index: {}]
  %s3 = sld [smem:[#allocation0]]
  $region18: #{tpu_custom_call.1} parent=0
    _
  %s5 = ssub.s32 1, %s3
  %s6 = scalar_select 0, %s5, %s3
  // Predicated region
  $region2: #{tpu_custom_call.1} parent=0 // pred_check
    _
  $region3: #{tpu_custom_call.1} parent=0 // pred_check_branch
    %8 = sbr.rel (0) target = $region5
  $region4: #{tpu_custom_call.1} parent=0 // pred_region
    _
  $region5: #{tpu_custom_call.1} parent=0 // pred_fallthru
    _
  // Predicated region
  $region6: #{tpu_custom_call.1} parent=0 // pred_check
    _
  $region7: #{tpu_custom_call.1} parent=0 // pred_check_branch
    %10 = sbr.rel (0) target = $region9
  $region8: #{tpu_custom_call.1} parent=0 // pred_region
    _
  $region9: #{tpu_custom_call.1} parent=0 // pred_fallthru
    _
  %v11 = vld [vmem:[%s0] sm:$0xff]
  %v12 = vld [vmem:[%s0 + $0x8] sm:$0xff]
  %v13 = vlaneseq
  %v14 = vand.u32 %v13, 127
  %15 = vset.pattern.permute.xlu0 0
  %16 = vperm.xlu0 %15, %v11
  %v17 = vpop.permute.xlu0 %16
  %18 = vset.pattern.permute.xlu0 0
  %19 = vperm.xlu0 %18, %v12
  %v20 = vpop.permute.xlu0 %19
  %vm21 = vcmp.eq.s32.totalorder %v17, %v14
  %vm22 = vcmp.eq.s32.totalorder %v20, %v14
  %v23 = vsel %vm21, 1, 0
  %v24 = vsel %vm22, 1, 0
  %v25 = vcvt.s32.f32 %v23
  %v26 = vcvt.s32.f32 %v24
  %v27 = vld [vmem:[%s1] sm:$0xff]
  %v28 = vld [vmem:[%s1 + $0x8] sm:$0xff]
  %v29 = vld [vmem:[%s1 + $0x10] sm:$0xff]
  %v30 = vld [vmem:[%s1 + $0x18] sm:$0xff]
  %v31 = vld [vmem:[%s1 + $0x20] sm:$0xff]
  %v32 = vld [vmem:[%s1 + $0x28] sm:$0xff]
  %v33 = vld [vmem:[%s1 + $0x30] sm:$0xff]
  %v34 = vld [vmem:[%s1 + $0x38] sm:$0xff]
  %v35 = vld [vmem:[%s1 + $0x40] sm:$0xff]
  %v36 = vld [vmem:[%s1 + $0x48] sm:$0xff]
  %v37 = vld [vmem:[%s1 + $0x50] sm:$0xff]
  %v38 = vld [vmem:[%s1 + $0x58] sm:$0xff]
  %v39 = vld [vmem:[%s1 + $0x60] sm:$0xff]
  %v40 = vld [vmem:[%s1 + $0x68] sm:$0xff]
  %vm41 = vcmask 261120
  %v43 = vsel %vm41, %v25, 0
  %v46 = vsel %vm41, %v26, 0
  %48 = vmatprep.subr.mxu0 0.0
  %49 = vmatpush1.msra.mxu0 %v27
  %50 = vmatprep.subr.mxu0 0.0
  %51 = vmatpush1.msra.mxu0 %v28
  %52 = vmatprep.subr.mxu0 0.0
  %53 = vmatpush1.msra.mxu0 %v29
  %54 = vmatprep.subr.mxu0 0.0
  %55 = vmatpush1.msra.mxu0 %v30
  %56 = vmatprep.subr.mxu0 0.0
  %57 = vmatpush1.msra.mxu0 0.0
  %58 = vmatprep.subr.mxu0 0.0
  %59 = vmatpush1.msra.mxu0 0.0
  %60 = vmatprep.subr.mxu0 0.0
  %61 = vmatpush1.msra.mxu0 0.0
  %62 = vmatprep.subr.mxu0 0.0
  %63 = vmatpush1.msra.mxu0 0.0
  %64 = vmatprep.subr.mxu0 0.0
  %65 = vmatpush1.msra.mxu0 0.0
  %66 = vmatprep.subr.mxu0 0.0
  %67 = vmatpush1.msra.mxu0 0.0
  %68 = vmatprep.subr.mxu0 0.0
  %69 = vmatpush1.msra.mxu0 0.0
  %70 = vmatprep.subr.mxu0 0.0
  %71 = vmatpush1.msra.mxu0 0.0
  %72 = vmatprep.subr.mxu0 0.0
  %73 = vmatpush1.msra.mxu0 0.0
  %74 = vmatprep.subr.mxu0 0.0
  %75 = vmatpush1.msra.mxu0 0.0
  %76 = vmatprep.subr.mxu0 0.0
  %77 = vmatpush1.msra.mxu0 0.0
  %78 = vmatprep.subr.mxu0 0.0
  %79 = vmatpush1.msra.mxu0 0.0
  %80 = vmatprep.subr.mxu0 0.0
  %81 = vmatpush1.msra.mxu0 0.0
  %82 = vmatprep.subr.mxu0 0.0
  %83 = vmatpush1.msra.mxu0 0.0
  %84 = vmatprep.subr.mxu0 0.0
  %85 = vmatpush1.msra.mxu0 0.0
  %86 = vmatprep.subr.mxu0 0.0
  %87 = vmatpush1.msra.mxu0 0.0
  %88 = vmatprep.subr.mxu0 0.0
  %89 = vmatpush1.msra.mxu0 0.0
  %90 = vmatprep.subr.mxu0 0.0
  %91 = vmatpush1.msra.mxu0 0.0
  %92 = vmatprep.subr.mxu0 0.0
  %93 = vmatpush1.msra.mxu0 0.0
  %94 = vmatprep.subr.mxu0 0.0
  %95 = vmatpush1.msra.mxu0 0.0
  %96 = vmatprep.subr.mxu0 0.0
  %97 = vmatpush1.msra.mxu0 0.0
  %98 = vmatprep.subr.mxu0 0.0
  %99 = vmatpush1.msra.mxu0 0.0
  %100 = vmatprep.subr.mxu0 0.0
  %101 = vmatpush1.msra.mxu0 0.0
  %102 = vmatprep.subr.mxu0 0.0
  %103 = vmatpush1.msra.mxu0 0.0
  %104 = vmatprep.subr.mxu0 0.0
  %105 = vmatpush1.msra.mxu0 0.0
  %106 = vmatprep.subr.mxu0 0.0
  %107 = vmatpush1.msra.mxu0 0.0
  %108 = vmatprep.subr.mxu0 0.0
  %109 = vmatpush1.msra.mxu0 0.0
  %110 = vmatprep.subr.mxu0 0.0
  %111 = vmatpush1.msra.mxu0 0.0
  %112 = vmatprep.mubr.f32.mxu0 0.0
  %113 = vmatmul.mubr.f32.gmra.mrb[0].mxu0 %v43
  %v114 = vpop.f32.mrb[0].mxu0
  %v115 = vadd.f32 0.0, %v114
  %v116 = vpop.f32.mrb[0].mxu0
  %117 = vmatprep.mubr.f32.mxu0 0.0
  %118 = vmatmul.mubr.f32.gmra.mrb[0].mxu0 %v46
  %v119 = vpop.f32.mrb[0].mxu0
  %v120 = vadd.f32 0.0, %v119
  %v121 = vpop.f32.mrb[0].mxu0
  %122 = vdwg.mxu0
  %vm123 = vcmask 326656
  %v125 = vsel %vm123, %v115, 0
  %v128 = vsel %vm123, %v120, 0
  %130 = vmatprep.subr.mxu0 0.0
  %131 = vmatpush1.msra.mxu0 %v31
  %132 = vmatprep.subr.mxu0 0.0
  %133 = vmatpush1.msra.mxu0 %v32
  %134 = vmatprep.subr.mxu0 0.0
  %135 = vmatpush1.msra.mxu0 %v33
  %136 = vmatprep.subr.mxu0 0.0
  %137 = vmatpush1.msra.mxu0 %v34
  %138 = vmatprep.subr.mxu0 0.0
  %139 = vmatpush1.msra.mxu0 %v35
  %140 = vmatprep.subr.mxu0 0.0
  %141 = vmatpush1.msra.mxu0 0.0
  %142 = vmatprep.subr.mxu0 0.0
  %143 = vmatpush1.msra.mxu0 0.0
  %144 = vmatprep.subr.mxu0 0.0
  %145 = vmatpush1.msra.mxu0 0.0
  %146 = vmatprep.subr.mxu0 0.0
  %147 = vmatpush1.msra.mxu0 0.0
  %148 = vmatprep.subr.mxu0 0.0
  %149 = vmatpush1.msra.mxu0 0.0
  %150 = vmatprep.subr.mxu0 0.0
  %151 = vmatpush1.msra.mxu0 0.0
  %152 = vmatprep.subr.mxu0 0.0
  %153 = vmatpush1.msra.mxu0 0.0
  %154 = vmatprep.subr.mxu0 0.0
  %155 = vmatpush1.msra.mxu0 0.0
  %156 = vmatprep.subr.mxu0 0.0
  %157 = vmatpush1.msra.mxu0 0.0
  %158 = vmatprep.subr.mxu0 0.0
  %159 = vmatpush1.msra.mxu0 0.0
  %160 = vmatprep.subr.mxu0 0.0
  %161 = vmatpush1.msra.mxu0 0.0
  %162 = vmatprep.subr.mxu0 0.0
  %163 = vmatpush1.msra.mxu0 0.0
  %164 = vmatprep.subr.mxu0 0.0
  %165 = vmatpush1.msra.mxu0 0.0
  %166 = vmatprep.subr.mxu0 0.0
  %167 = vmatpush1.msra.mxu0 0.0
  %168 = vmatprep.subr.mxu0 0.0
  %169 = vmatpush1.msra.mxu0 0.0
  %170 = vmatprep.subr.mxu0 0.0
  %171 = vmatpush1.msra.mxu0 0.0
  %172 = vmatprep.subr.mxu0 0.0
  %173 = vmatpush1.msra.mxu0 0.0
  %174 = vmatprep.subr.mxu0 0.0
  %175 = vmatpush1.msra.mxu0 0.0
  %176 = vmatprep.subr.mxu0 0.0
  %177 = vmatpush1.msra.mxu0 0.0
  %178 = vmatprep.subr.mxu0 0.0
  %179 = vmatpush1.msra.mxu0 0.0
  %180 = vmatprep.subr.mxu0 0.0
  %181 = vmatpush1.msra.mxu0 0.0
  %182 = vmatprep.subr.mxu0 0.0
  %183 = vmatpush1.msra.mxu0 0.0
  %184 = vmatprep.subr.mxu0 0.0
  %185 = vmatpush1.msra.mxu0 0.0
  %186 = vmatprep.subr.mxu0 0.0
  %187 = vmatpush1.msra.mxu0 0.0
  %188 = vmatprep.subr.mxu0 0.0
  %189 = vmatpush1.msra.mxu0 0.0
  %190 = vmatprep.subr.mxu0 0.0
  %191 = vmatpush1.msra.mxu0 0.0
  %192 = vmatprep.subr.mxu0 0.0
  %193 = vmatpush1.msra.mxu0 0.0
  %194 = vmatprep.mubr.f32.mxu0 0.0
  %195 = vmatmul.mubr.f32.gmra.mrb[0].mxu0 %v125
  %v196 = vpop.f32.mrb[0].mxu0
  %v197 = vadd.f32 0.0, %v196
  %v198 = vpop.f32.mrb[0].mxu0
  %199 = vmatprep.mubr.f32.mxu0 0.0
  %200 = vmatmul.mubr.f32.gmra.mrb[0].mxu0 %v128
  %v201 = vpop.f32.mrb[0].mxu0
  %v202 = vadd.f32 0.0, %v201
  %v203 = vpop.f32.mrb[0].mxu0
  %204 = vdwg.mxu0
  %v205 = vmax.f32 %v197, 0.0
  %v206 = vmax.f32 %v202, 0.0
  %v208 = vsel %vm123, %v205, 0
  %v211 = vsel %vm123, %v206, 0
  %213 = vmatprep.subr.mxu0 0.0
  %214 = vmatpush1.msra.mxu0 %v36
  %215 = vmatprep.subr.mxu0 0.0
  %216 = vmatpush1.msra.mxu0 %v37
  %217 = vmatprep.subr.mxu0 0.0
  %218 = vmatpush1.msra.mxu0 %v38
  %219 = vmatprep.subr.mxu0 0.0
  %220 = vmatpush1.msra.mxu0 %v39
  %221 = vmatprep.subr.mxu0 0.0
  %222 = vmatpush1.msra.mxu0 %v40
  %223 = vmatprep.subr.mxu0 0.0
  %224 = vmatpush1.msra.mxu0 0.0
  %225 = vmatprep.subr.mxu0 0.0
  %226 = vmatpush1.msra.mxu0 0.0
  %227 = vmatprep.subr.mxu0 0.0
  %228 = vmatpush1.msra.mxu0 0.0
  %229 = vmatprep.subr.mxu0 0.0
  %230 = vmatpush1.msra.mxu0 0.0
  %231 = vmatprep.subr.mxu0 0.0
  %232 = vmatpush1.msra.mxu0 0.0
  %233 = vmatprep.subr.mxu0 0.0
  %234 = vmatpush1.msra.mxu0 0.0
  %235 = vmatprep.subr.mxu0 0.0
  %236 = vmatpush1.msra.mxu0 0.0
  %237 = vmatprep.subr.mxu0 0.0
  %238 = vmatpush1.msra.mxu0 0.0
  %239 = vmatprep.subr.mxu0 0.0
  %240 = vmatpush1.msra.mxu0 0.0
  %241 = vmatprep.subr.mxu0 0.0
  %242 = vmatpush1.msra.mxu0 0.0
  %243 = vmatprep.subr.mxu0 0.0
  %244 = vmatpush1.msra.mxu0 0.0
  %245 = vmatprep.subr.mxu0 0.0
  %246 = vmatpush1.msra.mxu0 0.0
  %247 = vmatprep.subr.mxu0 0.0
  %248 = vmatpush1.msra.mxu0 0.0
  %249 = vmatprep.subr.mxu0 0.0
  %250 = vmatpush1.msra.mxu0 0.0
  %251 = vmatprep.subr.mxu0 0.0
  %252 = vmatpush1.msra.mxu0 0.0
  %253 = vmatprep.subr.mxu0 0.0
  %254 = vmatpush1.msra.mxu0 0.0
  %255 = vmatprep.subr.mxu0 0.0
  %256 = vmatpush1.msra.mxu0 0.0
  %257 = vmatprep.subr.mxu0 0.0
  %258 = vmatpush1.msra.mxu0 0.0
  %259 = vmatprep.subr.mxu0 0.0
  %260 = vmatpush1.msra.mxu0 0.0
  %261 = vmatprep.subr.mxu0 0.0
  %262 = vmatpush1.msra.mxu0 0.0
  %263 = vmatprep.subr.mxu0 0.0
  %264 = vmatpush1.msra.mxu0 0.0
  %265 = vmatprep.subr.mxu0 0.0
  %266 = vmatpush1.msra.mxu0 0.0
  %267 = vmatprep.subr.mxu0 0.0
  %268 = vmatpush1.msra.mxu0 0.0
  %269 = vmatprep.subr.mxu0 0.0
  %270 = vmatpush1.msra.mxu0 0.0
  %271 = vmatprep.subr.mxu0 0.0
  %272 = vmatpush1.msra.mxu0 0.0
  %273 = vmatprep.subr.mxu0 0.0
  %274 = vmatpush1.msra.mxu0 0.0
  %275 = vmatprep.subr.mxu0 0.0
  %276 = vmatpush1.msra.mxu0 0.0
  %277 = vmatprep.mubr.f32.mxu0 0.0
  %278 = vmatmul.mubr.f32.gmra.mrb[0].mxu0 %v208
  %v279 = vpop.f32.mrb[0].mxu0
  %v280 = vadd.f32 0.0, %v279
  %v281 = vpop.f32.mrb[0].mxu0
  %282 = vmatprep.mubr.f32.mxu0 0.0
  %283 = vmatmul.mubr.f32.gmra.mrb[0].mxu0 %v211
  %v284 = vpop.f32.mrb[0].mxu0
  %v285 = vadd.f32 0.0, %v284
  %v286 = vpop.f32.mrb[0].mxu0
  %287 = vdwg.mxu0
  %vm288 = vcmask 64512
  %289 = vst.msk [vmem:[%s2] sm:$0xff] %vm288, %v280
  %290 = vst.msk [vmem:[%s2 + $0x8] sm:$0xff] %vm288, %v285
  // Predicated region
  $region10: #{tpu_custom_call.1} parent=0 // pred_check
    _
  $region11: #{tpu_custom_call.1} parent=0 // pred_check_branch
    %292 = sbr.rel (0) target = $region13
  $region12: #{tpu_custom_call.1} parent=0 // pred_region
    _
  $region13: #{tpu_custom_call.1} parent=0 // pred_fallthru
    _
  // Predicated region
  $region14: #{tpu_custom_call.1} parent=0 // pred_check
    _
  $region15: #{tpu_custom_call.1} parent=0 // pred_check_branch
    %294 = sbr.rel (0) target = $region17
  $region16: #{tpu_custom_call.1} parent=0 // pred_region
    _
  $region17: #{tpu_custom_call.1} parent=0 // pred_fallthru
    _

</llo_original>
